<compile_context>
chip_gen: v5e
topology: v5e:2x2
jax: 0.10.0
libtpu: 0.0.40
codegen_flags: <defaults>
</compile_context>

<pallas_src>
import functools

import jax
import jax.numpy as jnp
from jax.experimental import pallas as pl
from jax.experimental.pallas import tpu as pltpu

KK = 768           # hidden width ("kk" in the PyTorch module)
IN_FEATURES = 63   # input feature dim
IN_PADDED = 64     # lane-friendlier K for the first matmul (zero-padded column)
EPS = 1e-5         # PyTorch BatchNorm1d default eps

# With bf16 activation tiles + a single 768x768 bf16 weight, a 512-1024 row tile
# needs <~12 MiB; 32 MiB clears the 16 MiB v5e scoped default while staying well
# under v7x's 64 MiB physical VMEM per TensorCore.
_VMEM_LIMIT = 32 * 1024 * 1024


def _round_up(n, m):
    return ((n + m - 1) // m) * m


# -----------------------------------------------------------------------------
# Kernels
# -----------------------------------------------------------------------------
def _linear_relu_stats_kernel(x_ref, w_ref, b_ref,
                              o_ref, sum_ref, sq_ref,
                              *, batch, tile, residual, mask_pad):
    """o = relu(x @ w' + b') [+ x], with BatchNorm already folded into (w', b').

    Also emits this tile's per-column sum / sum-of-squares of the f32 result so
    the wrapper can assemble the next BatchNorm's full-batch statistics.  Stats
    are per-tile outputs (no cross-step accumulator), so the batch grid axis
    stays "parallel" and v7x megacore can split it across both TensorCores.
    """
    x = x_ref[...]
    y = jnp.dot(x.astype(jnp.bfloat16), w_ref[...],          # bf16 in, f32 accumulate
                preferred_element_type=jnp.float32) + b_ref[...]
    y = jnp.maximum(y, 0.0)
    if residual:
        y = y + x.astype(jnp.float32)
    o_ref[...] = y.astype(o_ref.dtype)                        # bf16 activation storage

    # Full-batch statistics of the output (feed the next layer's BatchNorm).
    if mask_pad:
        row = (pl.program_id(0) * tile
               + jax.lax.broadcasted_iota(jnp.int32, (tile, 1), 0))
        y = jnp.where(row < batch, y, 0.0)                    # drop padded rows
    sum_ref[...] = jnp.sum(y, axis=0, keepdims=True)[None]    # (1, 1, KK)
    sq_ref[...] = jnp.sum(y * y, axis=0, keepdims=True)[None]


def _project_sigmoid_kernel(x_ref, w_ref, b_ref, o_ref):
    """c = sigmoid(x @ w3' + b3'); BN3 folded; 768->1 as multiply + lane reduce."""
    h = x_ref[...].astype(jnp.float32)
    logits = jnp.sum(h * w_ref[...], axis=-1, keepdims=True) + b_ref[...]
    # Exact sigmoid: the head is negligible work, no need for the approx recip.
    o_ref[...] = 1.0 / (1.0 + jnp.exp(-logits))
    # TODO(synk): the (tb, 1) output block lowers to masked vst.msk stores; a
    # transposed (1, tb) lane-dense block would clean this up (bytes are tiny).


# -----------------------------------------------------------------------------
# Wrapper helpers
# -----------------------------------------------------------------------------
def _bn_scale_shift(mean, var, gamma, beta):
    """Fold biased batch statistics + affine params into per-feature scale/shift."""
    scale = gamma * jax.lax.rsqrt(var + EPS)
    shift = beta - mean * scale
    return scale, shift


def _fold_bn_into_linear(scale, shift, w, b, out_dtype=jnp.bfloat16):
    """Absorb y = (x*scale + shift) @ w + b into x @ w' + b' (one-shot XLA fold)."""
    w32 = w.astype(jnp.float32)
    w_eff = (scale.reshape(-1, 1) * w32).astype(out_dtype)
    b_eff = shift @ w32 + b
    return w_eff, b_eff


def _moments_from_parts(sum_parts, sq_parts, n):
    """Combine per-tile (nb, 1, F) partial sums into biased mean / variance."""
    s = jnp.sum(sum_parts, axis=0)            # (1, F)
    q = jnp.sum(sq_parts, axis=0)
    mean = s / n
    # TODO(synk): E[x^2]-E[x]^2 in f32 can cancel for |mean| >> std; Welford-style
    # tile merging would be exact if that regime ever matters here.
    var = jnp.maximum(q / n - mean * mean, 0.0)
    return mean, var


def _resident(shape):
    """BlockSpec for an array held VMEM-resident across the whole batch grid."""
    return pl.BlockSpec(shape, lambda i: (0,) * len(shape))


# -----------------------------------------------------------------------------
# Forward
# -----------------------------------------------------------------------------
def model_retrieval_forward(x, params, *, tile=512):
    """x: (B, 63) float32. Returns (B, 1) float32 sigmoid outputs."""
    B, F = x.shape
    assert F == IN_FEATURES
    x = x.astype(jnp.float32)

    # --- BN1 statistics + fold: x is only (B, 63), plain XLA beats a kernel ---
    m1 = jnp.mean(x, axis=0, keepdims=True)
    v1 = jnp.mean((x - m1) ** 2, axis=0, keepdims=True)        # biased, train-mode
    s1, t1 = _bn_scale_shift(m1, v1, params["g1"], params["be1"])
    w1, b1 = _fold_bn_into_linear(s1, t1, params["w1"], params["b1"])
    w1 = jnp.pad(w1, ((0, IN_PADDED - F), (0, 0)))              # zero rows for pad cols

    tb = min(_round_up(tile, 8), _round_up(B, 8))   # batch tile (multiple of 8 rows)
    Bp = _round_up(B, tb)                            # padded batch
    nb = Bp // tb
    mask_pad = Bp != B
    # Padded rows / padded feature column are zero; padded rows are masked out of
    # the BN2 / BN3 statistics inside the layer kernels.
    x = jnp.pad(x, ((0, Bp - B), (0, IN_PADDED - F)))

    cparams = pltpu.CompilerParams(
        dimension_semantics=("parallel",), vmem_limit_bytes=_VMEM_LIMIT)

    def row_spec(f):
        return pl.BlockSpec((tb, f), lambda i: (i, 0))

    def stat_spec():
        return pl.BlockSpec((1, 1, KK), lambda i: (i, 0, 0))

    stat_shape = jax.ShapeDtypeStruct((nb, 1, KK), jnp.float32)

    def layer(inp, w, b, residual):
        return pl.pallas_call(
            functools.partial(_linear_relu_stats_kernel, batch=B, tile=tb,
                              residual=residual, mask_pad=mask_pad),
            grid=(nb,),
            in_specs=[row_spec(inp.shape[1]), _resident(w.shape), _resident(b.shape)],
            out_specs=(row_spec(KK), stat_spec(), stat_spec()),
            out_shape=(jax.ShapeDtypeStruct((Bp, KK), jnp.bfloat16),
                       stat_shape, stat_shape),
            compiler_params=cparams,
        )(inp, w, b)

    # --- pass 1: a = relu(Linear1(BN1(x)))    (+ per-tile BN2 stats) -----------
    a, asum, asq = layer(x, w1, b1, residual=False)
    m2, v2 = _moments_from_parts(asum, asq, B)
    s2, t2 = _bn_scale_shift(m2, v2, params["g2"], params["be2"])
    w2, b2 = _fold_bn_into_linear(s2, t2, params["w2"], params["b2"])

    # --- pass 2: b = relu(Linear2(BN2(a))) + a   (+ per-tile BN3 stats) --------
    bact, bsum, bsq = layer(a, w2, b2, residual=True)
    m3, v3 = _moments_from_parts(bsum, bsq, B)
    s3, t3 = _bn_scale_shift(m3, v3, params["g3"], params["be3"])
    w3 = s3 * params["w3"]                                               # (1, KK)
    b3 = jnp.sum(t3 * params["w3"], axis=-1, keepdims=True) + params["b3"]

    # --- pass 3: c = sigmoid(Linear3(BN3(b)))   (pure row-parallel) ------------
    c = pl.pallas_call(
        _project_sigmoid_kernel,
        grid=(nb,),
        in_specs=[row_spec(KK), _resident((1, KK)), _resident((1, 1))],
        out_specs=row_spec(1),
        out_shape=jax.ShapeDtypeStruct((Bp, 1), jnp.float32),
        compiler_params=cparams,
    )(bact, w3, b3)

    return c[:B]


# -----------------------------------------------------------------------------
# Parameters / reference
# -----------------------------------------------------------------------------
def init_params(key):
    """Deterministic synthetic parameters matching the PyTorch module's shapes.

    PyTorch Linear stores weight as (out, in); we pre-transpose to (in, out) and
    keep w1/w2 in bf16 (streamed weights).  w3 is stored as a (1, 768) row so the
    head kernel can do multiply + lane-reduce.  BN gamma/beta are (1, F) rows.
    """
    ks = jax.random.split(key, 12)

    def u(k, shape, fan_in):
        bound = 1.0 / jnp.sqrt(float(fan_in))
        return jax.random.uniform(k, shape, jnp.float32, -bound, bound)

    return {
        # net1: BatchNorm1d(63) + Linear(63 -> 768)
        "g1": 1.0 + 0.1 * jax.random.normal(ks[0], (1, IN_FEATURES), jnp.float32),
        "be1": 0.1 * jax.random.normal(ks[1], (1, IN_FEATURES), jnp.float32),
        "w1": u(ks[2], (IN_FEATURES, KK), IN_FEATURES).astype(jnp.bfloat16),
        "b1": u(ks[3], (1, KK), IN_FEATURES),
        # net2: BatchNorm1d(768) + Linear(768 -> 768)
        "g2": 1.0 + 0.1 * jax.random.normal(ks[4], (1, KK), jnp.float32),
        "be2": 0.1 * jax.random.normal(ks[5], (1, KK), jnp.float32),
        "w2": u(ks[6], (KK, KK), KK).astype(jnp.bfloat16),
        "b2": u(ks[7], (1, KK), KK),
        # net3: BatchNorm1d(768) + Linear(768 -> 1)
        "g3": 1.0 + 0.1 * jax.random.normal(ks[8], (1, KK), jnp.float32),
        "be3": 0.1 * jax.random.normal(ks[9], (1, KK), jnp.float32),
        "w3": u(ks[10], (1, KK), KK),
        "b3": u(ks[11], (1, 1), KK),
    }


def model_retrieval_reference(x, params):
    """Pure-JAX reference (train-mode BatchNorm1d with biased variance)."""
    def bn(v, g, b):
        m = jnp.mean(v, axis=0, keepdims=True)
        var = jnp.mean((v - m) ** 2, axis=0, keepdims=True)
        return (v - m) * jax.lax.rsqrt(var + EPS) * g + b

    a = jax.nn.relu(bn(x, params["g1"], params["be1"])
                    @ params["w1"].astype(jnp.float32) + params["b1"])
    b = jax.nn.relu(bn(a, params["g2"], params["be2"])
                    @ params["w2"].astype(jnp.float32) + params["b2"]) + a
    h = bn(b, params["g3"], params["be3"])
    logits = jnp.sum(h * params["w3"], axis=-1, keepdims=True) + params["b3"]
    return jax.nn.sigmoid(logits)


if __name__ == "__main__":
    key = jax.random.PRNGKey(0)
    kx, kp = jax.random.split(key)

    B = 200  # small, deliberately NOT a multiple of the tile (exercises padding/mask)
    x = jax.random.normal(kx, (B, IN_FEATURES), jnp.float32)
    params = init_params(kp)

    # tile=64 exercises the multi-tile batch grid, resident folded weights,
    # per-tile BN-statistics outputs and the padded-row masking path.
    out = model_retrieval_forward(x, params, tile=64)
    out = jax.block_until_ready(out)

    assert out.shape == (B, 1) and out.dtype == jnp.float32
    assert bool(jnp.all(jnp.isfinite(out)))
    assert bool(jnp.all((out >= 0.0) & (out <= 1.0)))   # sigmoid range

    ref = model_retrieval_reference(x, params)
    max_err = float(jnp.max(jnp.abs(out - ref)))
    # bf16 matmul inputs + bf16 activation storage + bf16 folded weights -> small diffs
    assert max_err < 4e-2, max_err

    print("KERNEL_OK")
</pallas_src>

<mosaic_0001>
module attributes {stable_mosaic.version = 11 : i64} {
  func.func @_linear_relu_stats_kernel(%arg0: i32, %arg1: memref<64x64xf32, #tpu.memory_space<vmem>>, %arg2: memref<64x768xbf16, #tpu.memory_space<vmem>>, %arg3: memref<1x768xf32, #tpu.memory_space<vmem>>, %arg4: memref<64x768xbf16, #tpu.memory_space<vmem>>, %arg5: memref<1x1x768xf32, #tpu.memory_space<vmem>>, %arg6: memref<1x1x768xf32, #tpu.memory_space<vmem>>) attributes {dimension_semantics = [#tpu.dimension_semantics<parallel>], iteration_bounds = array<i64: 4>, scalar_prefetch = 0 : i64, scratch_operands = 0 : i64, tpu.core_type = #tpu.core_type<tc>, window_params = [{transform_indices = @transform_0, window_bounds = array<i64: 64, 64>}, {pipeline_mode = #tpu.pipeline_mode<synchronous>, transform_indices = @transform_1, window_bounds = array<i64: 64, 768>}, {pipeline_mode = #tpu.pipeline_mode<synchronous>, transform_indices = @transform_2, window_bounds = array<i64: 1, 768>}, {transform_indices = @transform_3, window_bounds = array<i64: 64, 768>}, {transform_indices = @transform_4, window_bounds = array<i64: 1, 1, 768>}, {transform_indices = @transform_5, window_bounds = array<i64: 1, 1, 768>}]} {
    %c0 = arith.constant 0 : index
    %c0_0 = arith.constant 0 : index
    %0 = vector.load %arg1[%c0, %c0_0] : memref<64x64xf32, #tpu.memory_space<vmem>>, vector<64x64xf32>
    %1 = arith.truncf %0 : vector<64x64xf32> to vector<64x64xbf16>
    %c0_1 = arith.constant 0 : index
    %c0_2 = arith.constant 0 : index
    %2 = vector.load %arg2[%c0_1, %c0_2] : memref<64x768xbf16, #tpu.memory_space<vmem>>, vector<64x768xbf16>
    %cst = arith.constant dense<0.000000e+00> : vector<64x768xf32>
    %3 = tpu.matmul %1, %2, %cst {dimension_numbers = #tpu.dot_dimension_numbers<[1], [0], [0], [1], [0, 0, 1, 1], [], []>} : vector<64x64xbf16>, vector<64x768xbf16>, vector<64x768xf32> -> vector<64x768xf32>
    %c0_3 = arith.constant 0 : index
    %c0_4 = arith.constant 0 : index
    %4 = vector.load %arg3[%c0_3, %c0_4] : memref<1x768xf32, #tpu.memory_space<vmem>>, vector<1x768xf32>
    %5 = vector.broadcast %4 : vector<1x768xf32> to vector<64x768xf32>
    %6 = arith.addf %3, %5 : vector<64x768xf32>
    %cst_5 = arith.constant 0.000000e+00 : f32
    %7 = vector.broadcast %cst_5 : f32 to vector<64x768xf32>
    %8 = arith.maximumf %6, %7 : vector<64x768xf32>
    %9 = arith.truncf %8 : vector<64x768xf32> to vector<64x768xbf16>
    %c0_6 = arith.constant 0 : index
    %c0_7 = arith.constant 0 : index
    %10 = vector.load %arg4[%c0_6, %c0_7] : memref<64x768xbf16, #tpu.memory_space<vmem>>, vector<64x768xbf16>
    tpu.vector_store %arg4[%c0_6, %c0_7], %9 {strides = array<i32>} : memref<64x768xbf16, #tpu.memory_space<vmem>>, vector<64x768xbf16>,
    %c64_i32 = arith.constant 64 : i32
    %11 = arith.muli %arg0, %c64_i32 : i32
    %12 = tpu.iota {dimensions = array<i32: 0>} : vector<64x1xi32>
    %13 = vector.broadcast %11 : i32 to vector<64x1xi32>
    %14 = arith.addi %13, %12 : vector<64x1xi32>
    %c200_i32 = arith.constant 200 : i32
    %15 = vector.broadcast %c200_i32 : i32 to vector<64x1xi32>
    %16 = arith.cmpi slt, %14, %15 : vector<64x1xi32>
    %cst_8 = arith.constant 0.000000e+00 : f32
    %17 = vector.shape_cast %16 : vector<64x1xi1> to vector<64x1xi1>
    %18 = vector.broadcast %17 : vector<64x1xi1> to vector<64x768xi1>
    %19 = vector.broadcast %cst_8 : f32 to vector<64x768xf32>
    %20 = arith.select %18, %8, %19 : vector<64x768xi1>, vector<64x768xf32>
    %cst_9 = arith.constant dense<0.000000e+00> : vector<768xf32>
    %21 = vector.multi_reduction <add>, %20, %cst_9 [0] : vector<64x768xf32> to vector<768xf32>
    %22 = vector.shape_cast %21 : vector<768xf32> to vector<1x768xf32>
    %23 = vector.shape_cast %22 : vector<1x768xf32> to vector<1x1x768xf32>
    %c0_10 = arith.constant 0 : index
    %c0_11 = arith.constant 0 : index
    %c0_12 = arith.constant 0 : index
    %24 = vector.load %arg5[%c0_10, %c0_11, %c0_12] : memref<1x1x768xf32, #tpu.memory_space<vmem>>, vector<1x1x768xf32>
    tpu.vector_store %arg5[%c0_10, %c0_11, %c0_12], %23 {strides = array<i32>} : memref<1x1x768xf32, #tpu.memory_space<vmem>>, vector<1x1x768xf32>,
    %25 = arith.mulf %20, %20 : vector<64x768xf32>
    %cst_13 = arith.constant dense<0.000000e+00> : vector<768xf32>
    %26 = vector.multi_reduction <add>, %25, %cst_13 [0] : vector<64x768xf32> to vector<768xf32>
    %27 = vector.shape_cast %26 : vector<768xf32> to vector<1x768xf32>
    %28 = vector.shape_cast %27 : vector<1x768xf32> to vector<1x1x768xf32>
    %c0_14 = arith.constant 0 : index
    %c0_15 = arith.constant 0 : index
    %c0_16 = arith.constant 0 : index
    %29 = vector.load %arg6[%c0_14, %c0_15, %c0_16] : memref<1x1x768xf32, #tpu.memory_space<vmem>>, vector<1x1x768xf32>
    tpu.vector_store %arg6[%c0_14, %c0_15, %c0_16], %28 {strides = array<i32>} : memref<1x1x768xf32, #tpu.memory_space<vmem>>, vector<1x1x768xf32>,
    return
  }
  func.func @transform_0(%arg0: i32) -> (i32, i32) {
    %c0_i32 = arith.constant 0 : i32
    %c0_i32_0 = arith.constant 0 : i32
    return %arg0, %c0_i32 : i32, i32
  }
  func.func @transform_1(%arg0: i32) -> (i32, i32) {
    %c0_i32 = arith.constant 0 : i32
    %c0_i32_0 = arith.constant 0 : i32
    %c0_i32_1 = arith.constant 0 : i32
    return %c0_i32, %c0_i32_0 : i32, i32
  }
  func.func @transform_2(%arg0: i32) -> (i32, i32) {
    %c0_i32 = arith.constant 0 : i32
    %c0_i32_0 = arith.constant 0 : i32
    %c0_i32_1 = arith.constant 0 : i32
    return %c0_i32, %c0_i32_0 : i32, i32
  }
  func.func @transform_3(%arg0: i32) -> (i32, i32) {
    %c0_i32 = arith.constant 0 : i32
    %c0_i32_0 = arith.constant 0 : i32
    return %arg0, %c0_i32 : i32, i32
  }
  func.func @transform_4(%arg0: i32) -> (i32, i32, i32) {
    %c0_i32 = arith.constant 0 : i32
    %c0_i32_0 = arith.constant 0 : i32
    %c0_i32_1 = arith.constant 0 : i32
    return %arg0, %c0_i32, %c0_i32_0 : i32, i32, i32
  }
  func.func @transform_5(%arg0: i32) -> (i32, i32, i32) {
    %c0_i32 = arith.constant 0 : i32
    %c0_i32_0 = arith.constant 0 : i32
    %c0_i32_1 = arith.constant 0 : i32
    return %arg0, %c0_i32, %c0_i32_0 : i32, i32, i32
  }
}

</mosaic_0001>

<llo_original>
// kernel: tpu_custom_call.1
$region0: #{tpu_custom_call.1}
  #allocation0 [shape = 'u32[]', space=smem, size = 0x4, offset = 0x4, fixed_abs, tag = 'smem constant byte address 0x4 - core index']
  #allocation1 [shape = 'u32[72,128]{1,0:T(1,128)}', space=vmem, size = 0x9000, scoped, tag = 'internal scratch']
  %s0 = inlined_call_operand.vmem [shape: f32[256,64], index: 0, kind: input, shape index: {}]
  %s1 = inlined_call_operand.vmem [shape: bf16[64,768], index: 1, kind: input, shape index: {}]
  %s2 = inlined_call_operand.vmem [shape: f32[1,768], index: 2, kind: input, shape index: {}]
  %s3 = inlined_call_operand.hbm [shape: bf16[256,768], index: 3, kind: output, shape index: {0}]
  %s4 = inlined_call_operand.hbm [shape: f32[4,1,768], index: 4, kind: output, shape index: {1}]
  %s5 = inlined_call_operand.hbm [shape: f32[4,1,768], index: 5, kind: output, shape index: {2}]
  %6 = xla_tuple %s3, %s4, %s5
  %s7 = sld [smem:[#allocation0]]
  $region61: #{tpu_custom_call.1} parent=0
    _
  %s9 = ssub.s32 1, %s7
  %s10 = scalar_select 0, %s9, %s7
  $region1: #{tpu_custom_call.1} parent=0
    #allocation2 [shape = 'u8[196608]{0}', space=vmem, size = 0x30000, scoped, tag = 'output window, operand 0']
    #allocation3 [shape = 's32[2]{0}', space=sflag, size = 0x8, scoped, tag = 'scoped memory for tpu_custom_call.1']
    #allocation4 [shape = 'u8[6144]{0}', space=vmem, size = 0x1800, scoped, tag = 'output window, operand 1']
    #allocation5 [shape = 's32[2]{0}', space=sflag, size = 0x8, scoped, tag = 'scoped memory for tpu_custom_call.1']
    #allocation6 [shape = 'u8[6144]{0}', space=vmem, size = 0x1800, scoped, tag = 'output window, operand 2']
    %11 = vsyncpa [#allocation3], 0
    %s12 = scalar_lea.sflag [#allocation3], 1
    %13 = vsyncpa %s12, 0
    %14 = vsyncpa [#allocation5], 0
    %s15 = scalar_lea.sflag [#allocation5], 1
    %16 = vsyncpa %s15, 0
    loop: start=0, step=1, limit=6
    $region2: #{tpu_custom_call.1} parent=1 // loop_pre_header
      _
    $region3: #{tpu_custom_call.1} parent=1 // loop_header
      %s18 = sphi 0, %s22
      %p19 = scmp.ge.s32.totalorder %s18, 6
      %s28 = sphi 0, %s30
      %s31 = sphi 0, %s28
      %s32 = sphi 0, %s31
      %s48 = sphi 0, %s32
      %s52 = sphi 0, %s52
      %s54 = sphi 0, %s52
      %s55 = sphi 0, %s54
      %s69 = sphi 0, %s55
      %s73 = sphi 0, %s73
      %s75 = sphi 0, %s73
      %s76 = sphi 0, %s75
      %s90 = sphi 0, %s76
      %s96 = sphi 0, %s98
      %s99 = sphi 0, %s96
      %s100 = sphi 0, %s99
      %s116 = sphi 0, %s100
      %s122 = sphi 0, %s124
      %s125 = sphi 0, %s122
      %s126 = sphi 0, %s125
      %s142 = sphi 0, %s126
      %s148 = sphi 0, %s150
      %s151 = sphi 0, %s148
      %s152 = sphi 0, %s151
      %s168 = sphi 0, %s152
    $region4: #{tpu_custom_call.1} parent=1 // loop_header_branch
      %21 = sbr.rel (%p19) target = $region8
    $region5: #{tpu_custom_call.1} parent=1 // loop_body
      %s23 = ssub.s32 %s18, 1
      %s24 = ssub.s32 %s18, 2
      %s25 = sadd.s32 %s18, 1
      %s26 = ssub.s32 %s18, %s25
      %p27 = scmp.eq.s32.totalorder %s26, 0
      %s29 = sadd.s32 %s28, 1
      %s30 = scalar_select %p27, %s28, %s29
      %p33 = pneg %p27
      %p34 = scmp.eq.s32.totalorder %s18, 3
      %p35 = por %p33, %p34
      %p36 = scmp.ne.s32.totalorder %s28, %s31
      %p37 = scmp.eq.s32.totalorder %s18, 0
      %p38 = por %p36, %p37
      %p39 = scmp.ne.s32.totalorder %s28, %s31
      %p40 = scmp.eq.s32.totalorder %s23, 3
      %p41 = por %p39, %p40
      %p42 = scmp.ne.s32.totalorder %s31, %s32
      %p43 = scmp.eq.s32.totalorder %s23, 0
      %p44 = por %p42, %p43
      %p45 = scmp.ne.s32.totalorder %s31, %s32
      %p46 = scmp.eq.s32.totalorder %s24, 3
      %p47 = por %p45, %p46
      %p49 = scmp.ne.s32.totalorder %s32, %s48
      %p50 = scmp.eq.s32.totalorder %s24, 0
      %p51 = por %p49, %p50
      %s53 = sadd.s32 %s52, 1
      %p56 = scmp.eq.s32.totalorder %s18, 3
      %p57 = scmp.ne.s32.totalorder %s52, %s54
      %p58 = scmp.eq.s32.totalorder %s18, 0
      %p59 = por %p57, %p58
      %p60 = scmp.ne.s32.totalorder %s52, %s54
      %p61 = scmp.eq.s32.totalorder %s23, 3
      %p62 = por %p60, %p61
      %p63 = scmp.ne.s32.totalorder %s54, %s55
      %p64 = scmp.eq.s32.totalorder %s23, 0
      %p65 = por %p63, %p64
      %p66 = scmp.ne.s32.totalorder %s54, %s55
      %p67 = scmp.eq.s32.totalorder %s24, 3
      %p68 = por %p66, %p67
      %p70 = scmp.ne.s32.totalorder %s55, %s69
      %p71 = scmp.eq.s32.totalorder %s24, 0
      %p72 = por %p70, %p71
      %s74 = sadd.s32 %s73, 1
      %p77 = scmp.eq.s32.totalorder %s18, 3
      %p78 = scmp.ne.s32.totalorder %s73, %s75
      %p79 = scmp.eq.s32.totalorder %s18, 0
      %p80 = por %p78, %p79
      %p81 = scmp.ne.s32.totalorder %s73, %s75
      %p82 = scmp.eq.s32.totalorder %s23, 3
      %p83 = por %p81, %p82
      %p84 = scmp.ne.s32.totalorder %s75, %s76
      %p85 = scmp.eq.s32.totalorder %s23, 0
      %p86 = por %p84, %p85
      %p87 = scmp.ne.s32.totalorder %s75, %s76
      %p88 = scmp.eq.s32.totalorder %s24, 3
      %p89 = por %p87, %p88
      %p91 = scmp.ne.s32.totalorder %s76, %s90
      %p92 = scmp.eq.s32.totalorder %s24, 0
      %p93 = por %p91, %p92
      %s94 = ssub.s32 %s18, %s25
      %p95 = scmp.eq.s32.totalorder %s94, 0
      %s97 = sadd.s32 %s96, 1
      %s98 = scalar_select %p95, %s96, %s97
      %p101 = pneg %p95
      %p102 = scmp.eq.s32.totalorder %s18, 3
      %p103 = por %p101, %p102
      %p104 = scmp.ne.s32.totalorder %s96, %s99
      %p105 = scmp.eq.s32.totalorder %s18, 0
      %p106 = por %p104, %p105
      %p107 = scmp.ne.s32.totalorder %s96, %s99
      %p108 = scmp.eq.s32.totalorder %s23, 3
      %p109 = por %p107, %p108
      %p110 = scmp.ne.s32.totalorder %s99, %s100
      %p111 = scmp.eq.s32.totalorder %s23, 0
      %p112 = por %p110, %p111
      %p113 = scmp.ne.s32.totalorder %s99, %s100
      %p114 = scmp.eq.s32.totalorder %s24, 3
      %p115 = por %p113, %p114
      %p117 = scmp.ne.s32.totalorder %s100, %s116
      %p118 = scmp.eq.s32.totalorder %s24, 0
      %p119 = por %p117, %p118
      %s120 = ssub.s32 %s18, %s25
      %p121 = scmp.eq.s32.totalorder %s120, 0
      %s123 = sadd.s32 %s122, 1
      %s124 = scalar_select %p121, %s122, %s123
      %p127 = pneg %p121
      %p128 = scmp.eq.s32.totalorder %s18, 3
      %p129 = por %p127, %p128
      %p130 = scmp.ne.s32.totalorder %s122, %s125
      %p131 = scmp.eq.s32.totalorder %s18, 0
      %p132 = por %p130, %p131
      %p133 = scmp.ne.s32.totalorder %s122, %s125
      %p134 = scmp.eq.s32.totalorder %s23, 3
      %p135 = por %p133, %p134
      %p136 = scmp.ne.s32.totalorder %s125, %s126
      %p137 = scmp.eq.s32.totalorder %s23, 0
      %p138 = por %p136, %p137
      %p139 = scmp.ne.s32.totalorder %s125, %s126
      %p140 = scmp.eq.s32.totalorder %s24, 3
      %p141 = por %p139, %p140
      %p143 = scmp.ne.s32.totalorder %s126, %s142
      %p144 = scmp.eq.s32.totalorder %s24, 0
      %p145 = por %p143, %p144
      %s146 = ssub.s32 %s18, %s25
      %p147 = scmp.eq.s32.totalorder %s146, 0
      %s149 = sadd.s32 %s148, 1
      %s150 = scalar_select %p147, %s148, %s149
      %p153 = pneg %p147
      %p154 = scmp.eq.s32.totalorder %s18, 3
      %p155 = por %p153, %p154
      %p156 = scmp.ne.s32.totalorder %s148, %s151
      %p157 = scmp.eq.s32.totalorder %s18, 0
      %p158 = por %p156, %p157
      %p159 = scmp.ne.s32.totalorder %s148, %s151
      %p160 = scmp.eq.s32.totalorder %s23, 3
      %p161 = por %p159, %p160
      %p162 = scmp.ne.s32.totalorder %s151, %s152
      %p163 = scmp.eq.s32.totalorder %s23, 0
      %p164 = por %p162, %p163
      %p165 = scmp.ne.s32.totalorder %s151, %s152
      %p166 = scmp.eq.s32.totalorder %s24, 3
      %p167 = por %p165, %p166
      %p169 = scmp.ne.s32.totalorder %s152, %s168
      %p170 = scmp.eq.s32.totalorder %s24, 0
      %p171 = por %p169, %p170
      %p172 = scmp.le.s32.totalorder 1, %s18
      %p173 = scmp.lt.s32.totalorder %s18, 5
      %p174 = pnand %p172, %p173
      %p175 = pneg %p174
      // Predicated region
      $region9: #{tpu_custom_call.1} parent=5 // pred_check
        _
      $region10: #{tpu_custom_call.1} parent=5 // pred_check_branch
        %177 = sbr.rel (%p174) target = $region12
      $region11: #{tpu_custom_call.1} parent=5 // pred_region
        %s178 = ssub.s32 %s18, 1
        // Predicated region
        $region13: #{tpu_custom_call.1} parent=11 // pred_check
          %p179 = pneg %p65
        $region14: #{tpu_custom_call.1} parent=11 // pred_check_branch
          %181 = sbr.rel (%p179) target = $region16
        $region15: #{tpu_custom_call.1} parent=11 // pred_region
          _
        $region16: #{tpu_custom_call.1} parent=11 // pred_fallthru
          _
        // Predicated region
        $region17: #{tpu_custom_call.1} parent=11 // pred_check
          %p182 = pneg %p86
        $region18: #{tpu_custom_call.1} parent=11 // pred_check_branch
          %184 = sbr.rel (%p182) target = $region20
        $region19: #{tpu_custom_call.1} parent=11 // pred_region
          _
        $region20: #{tpu_custom_call.1} parent=11 // pred_fallthru
          _
      $region12: #{tpu_custom_call.1} parent=5 // pred_fallthru
        _
      %p185 = scmp.lt.s32.totalorder %s18, 4
      // Predicated region
      $region21: #{tpu_custom_call.1} parent=5 // pred_check
        %p186 = pneg %p185
      $region22: #{tpu_custom_call.1} parent=5 // pred_check_branch
        %188 = sbr.rel (%p186) target = $region24
      $region23: #{tpu_custom_call.1} parent=5 // pred_region
        // Predicated region
        $region25: #{tpu_custom_call.1} parent=23 // pred_check
          %p189 = pneg %p38
        $region26: #{tpu_custom_call.1} parent=23 // pred_check_branch
          %191 = sbr.rel (%p189) target = $region28
        $region27: #{tpu_custom_call.1} parent=23 // pred_region
          %s192 = smul.u32 8, %s18
          %p193 = scmp.lt.s32.totalorder %s192, 31
          %s194 = scalar_select %p193, %s192, 31
          %s195 = smul.addr %s194, 8
          %s196 = scalar_lea.vmem %s0, %s195
          %s197 = smul.u32 8, %s18
        $region28: #{tpu_custom_call.1} parent=23 // pred_fallthru
          _
      $region24: #{tpu_custom_call.1} parent=5 // pred_fallthru
        _
      %p198 = scmp.le.s32.totalorder 1, %s18
      %p199 = scmp.lt.s32.totalorder %s18, 5
      %p200 = pnand %p198, %p199
      %p201 = pneg %p200
      // Predicated region
      $region29: #{tpu_custom_call.1} parent=5 // pred_check
        _
      $region30: #{tpu_custom_call.1} parent=5 // pred_check_branch
        %203 = sbr.rel (%p200) target = $region32
      $region31: #{tpu_custom_call.1} parent=5 // pred_region
        %s204 = ssub.s32 %s18, 1
        %s205 = smul.u32 8, %s23
        %p206 = scmp.lt.s32.totalorder %s205, 31
        %s207 = scalar_select %p206, %s205, 31
        %s208 = smul.addr %s207, 8
        %s209 = scalar_lea.vmem %s0, %s208
        %p210 = pneg %p44
        %p211 = pneg %p41
        %p212 = pneg %p65
        %p213 = pneg %p62
        %p214 = pneg %p86
        %p215 = pneg %p83
        %p216 = pneg %p112
        %p217 = pneg %p109
        %s218 = sand.u32 %s99, 1
        %s219 = scalar_lea.sflag [#allocation3], %s218
        %s220 = sand.u32 %s99, 1
        %s221 = smul.addr %s220, 192
        %s222 = scalar_lea.vmem [#allocation2], %s221
        %p223 = pneg %p138
        %p224 = pneg %p135
        %s225 = sand.u32 %s23, 1
        %s226 = scalar_lea.sflag [#allocation5], %s225
        %s227 = sand.u32 %s125, 1
        %s228 = smul.addr %s227, 6
        %s229 = scalar_lea.vmem [#allocation4], %s228
        %p230 = pneg %p164
        %p231 = pneg %p161
        %s232 = sand.u32 %s23, 1
        %s233 = scalar_lea.sflag [#allocation5], %s232
        %s234 = sand.u32 %s151, 1
        %s235 = smul.addr %s234, 6
        %s236 = scalar_lea.vmem [#allocation6], %s235
        %s237 = smul.u32 8, %s23
        %p238 = scmp.lt.s32.totalorder %s237, 31
        %s239 = scalar_select %p238, %s237, 31
        %s240 = smul.addr %s239, 8
        %s241 = scalar_lea.vmem %s0, %s240
        %s242 = smul.u32 8, %s23
        %s243 = smul.u32 8, %s23
        %v245 = vld [vmem:[%s241] sm:$0xff]
        %v246 = vld [vmem:[%s241 + $0x8] sm:$0xff]
        %v247 = vld [vmem:[%s241 + $0x10] sm:$0xff]
        %v248 = vld [vmem:[%s241 + $0x18] sm:$0xff]
        %v249 = vld [vmem:[%s241 + $0x20] sm:$0xff]
        %v250 = vld [vmem:[%s241 + $0x28] sm:$0xff]
        %v251 = vld [vmem:[%s241 + $0x30] sm:$0xff]
        %v252 = vld [vmem:[%s241 + $0x38] sm:$0xff]
        %v253 = vpack.c.bf16 %v246, %v245
        %v254 = vpack.c.bf16 %v248, %v247
        %v255 = vpack.c.bf16 %v250, %v249
        %v256 = vpack.c.bf16 %v252, %v251
        %v257 = vld [vmem:[%s1] sm:$0xff]
        %v258 = vld [vmem:[%s1 + $0x8] sm:$0xff]
        %v259 = vld [vmem:[%s1 + $0x10] sm:$0xff]
        %v260 = vld [vmem:[%s1 + $0x18] sm:$0xff]
        %v261 = vld [vmem:[%s1 + $0x20] sm:$0xff]
        %v262 = vld [vmem:[%s1 + $0x28] sm:$0xff]
        %v263 = vld [vmem:[%s1 + $0x30] sm:$0xff]
        %v264 = vld [vmem:[%s1 + $0x38] sm:$0xff]
        %v265 = vld [vmem:[%s1 + $0x40] sm:$0xff]
        %v266 = vld [vmem:[%s1 + $0x48] sm:$0xff]
        %v267 = vld [vmem:[%s1 + $0x50] sm:$0xff]
        %v268 = vld [vmem:[%s1 + $0x58] sm:$0xff]
        %v269 = vld [vmem:[%s1 + $0x60] sm:$0xff]
        %v270 = vld [vmem:[%s1 + $0x68] sm:$0xff]
        %v271 = vld [vmem:[%s1 + $0x70] sm:$0xff]
        %v272 = vld [vmem:[%s1 + $0x78] sm:$0xff]
        %v273 = vld [vmem:[%s1 + $0x80] sm:$0xff]
        %v274 = vld [vmem:[%s1 + $0x88] sm:$0xff]
        %v275 = vld [vmem:[%s1 + $0x90] sm:$0xff]
        %v276 = vld [vmem:[%s1 + $0x98] sm:$0xff]
        %v277 = vld [vmem:[%s1 + $0xa0] sm:$0xff]
        %v278 = vld [vmem:[%s1 + $0xa8] sm:$0xff]
        %v279 = vld [vmem:[%s1 + $0xb0] sm:$0xff]
        %v280 = vld [vmem:[%s1 + $0xb8] sm:$0xff]
        %v281 = vld [vmem:[%s2] sm:$0x3f]
        %v283 = vperm.slane %v281, 0
        %v284 = vperm.slane %v281, 1
        %v285 = vperm.slane %v281, 2
        %v286 = vperm.slane %v281, 3
        %v287 = vperm.slane %v281, 4
        %v288 = vperm.slane %v281, 5
        %v319 = vunpack.c.l.b16 %v257
        %v320 = vunpack.c.h.b16 %v257
        %v321 = vunpack.c.l.b16 %v258
        %v322 = vunpack.c.h.b16 %v258
        %v323 = vunpack.c.l.b16 %v259
        %v324 = vunpack.c.h.b16 %v259
        %v325 = vunpack.c.l.b16 %v260
        %v326 = vunpack.c.h.b16 %v260
        %v327 = vunpack.c.l.b16 %v261
        %v328 = vunpack.c.h.b16 %v261
        %v329 = vunpack.c.l.b16 %v262
        %v330 = vunpack.c.h.b16 %v262
        %v331 = vunpack.c.l.b16 %v263
        %v332 = vunpack.c.h.b16 %v263
        %v333 = vunpack.c.l.b16 %v264
        %v334 = vunpack.c.h.b16 %v264
        %v335 = vunpack.c.l.b16 %v265
        %v336 = vunpack.c.h.b16 %v265
        %v337 = vunpack.c.l.b16 %v266
        %v338 = vunpack.c.h.b16 %v266
        %v339 = vunpack.c.l.b16 %v267
        %v340 = vunpack.c.h.b16 %v267
        %v341 = vunpack.c.l.b16 %v268
        %v342 = vunpack.c.h.b16 %v268
        %v343 = vunpack.c.l.b16 %v269
        %v344 = vunpack.c.h.b16 %v269
        %v345 = vunpack.c.l.b16 %v270
        %v346 = vunpack.c.h.b16 %v270
        %v347 = vunpack.c.l.b16 %v271
        %v348 = vunpack.c.h.b16 %v271
        %v349 = vunpack.c.l.b16 %v272
        %v350 = vunpack.c.h.b16 %v272
        %v351 = vunpack.c.l.b16 %v273
        %v352 = vunpack.c.h.b16 %v273
        %v353 = vunpack.c.l.b16 %v274
        %v354 = vunpack.c.h.b16 %v274
        %v355 = vunpack.c.l.b16 %v275
        %v356 = vunpack.c.h.b16 %v275
        %v357 = vunpack.c.l.b16 %v276
        %v358 = vunpack.c.h.b16 %v276
        %v359 = vunpack.c.l.b16 %v277
        %v360 = vunpack.c.h.b16 %v277
        %v361 = vunpack.c.l.b16 %v278
        %v362 = vunpack.c.h.b16 %v278
        %v363 = vunpack.c.l.b16 %v279
        %v364 = vunpack.c.h.b16 %v279
        %v365 = vunpack.c.l.b16 %v280
        %v366 = vunpack.c.h.b16 %v280
        %v367 = vpack.c.b16 %v325, %v319
        %v368 = vpack.c.b16 %v326, %v320
        %v369 = vpack.c.b16 %v327, %v321
        %v370 = vpack.c.b16 %v328, %v322
        %v371 = vpack.c.b16 %v329, %v323
        %v372 = vpack.c.b16 %v330, %v324
        %v373 = vpack.c.b16 %v337, %v331
        %v374 = vpack.c.b16 %v338, %v332
        %v375 = vpack.c.b16 %v339, %v333
        %v376 = vpack.c.b16 %v340, %v334
        %v377 = vpack.c.b16 %v341, %v335
        %v378 = vpack.c.b16 %v342, %v336
        %v379 = vpack.c.b16 %v349, %v343
        %v380 = vpack.c.b16 %v350, %v344
        %v381 = vpack.c.b16 %v351, %v345
        %v382 = vpack.c.b16 %v352, %v346
        %v383 = vpack.c.b16 %v353, %v347
        %v384 = vpack.c.b16 %v354, %v348
        %v385 = vpack.c.b16 %v361, %v355
        %v386 = vpack.c.b16 %v362, %v356
        %v387 = vpack.c.b16 %v363, %v357
        %v388 = vpack.c.b16 %v364, %v358
        %v389 = vpack.c.b16 %v365, %v359
        %v390 = vpack.c.b16 %v366, %v360
        %vm415 = vcmask 523264
        %v417 = vsel %vm415, %v253, 0
        %v420 = vsel %vm415, %v254, 0
        %v423 = vsel %vm415, %v255, 0
        %v426 = vsel %vm415, %v256, 0
        %428 = vmatpush.bf16.msra.mxu0 0
        %429 = vmatpush.bf16.msra.mxu0 0
        %430 = vmatpush.bf16.msra.mxu0 0
        %431 = vmatpush.bf16.msra.mxu0 0
        %432 = vmatpush.bf16.msra.mxu0 %v385
        %433 = vmatpush.bf16.msra.mxu0 %v379
        %434 = vmatpush.bf16.msra.mxu0 %v373
        %435 = vmatpush.bf16.msra.mxu0 %v367
        %436 = vmatmul.bf16.gmra.mxu0 %v417
        %v437 = vpop.f32.mrf.mxu0
        %v438 = vadd.f32 %v283, %v437
        %v439 = vpop.f32.mrf.mxu0
        %v440 = vadd.f32 %v283, %v439
        %441 = vmatmul.bf16.gmra.mxu0 %v420
        %v442 = vpop.f32.mrf.mxu0
        %v443 = vadd.f32 %v283, %v442
        %v444 = vpop.f32.mrf.mxu0
        %v445 = vadd.f32 %v283, %v444
        %446 = vmatmul.bf16.gmra.mxu0 %v423
        %v447 = vpop.f32.mrf.mxu0
        %v448 = vadd.f32 %v283, %v447
        %v449 = vpop.f32.mrf.mxu0
        %v450 = vadd.f32 %v283, %v449
        %451 = vmatmul.bf16.gmra.mxu0 %v426
        %v452 = vpop.f32.mrf.mxu0
        %v453 = vadd.f32 %v283, %v452
        %v454 = vpop.f32.mrf.mxu0
        %v455 = vadd.f32 %v283, %v454
        %456 = vdwg.mxu0
        %457 = vmatpush.bf16.msra.mxu0 0
        %458 = vmatpush.bf16.msra.mxu0 0
        %459 = vmatpush.bf16.msra.mxu0 0
        %460 = vmatpush.bf16.msra.mxu0 0
        %461 = vmatpush.bf16.msra.mxu0 %v386
        %462 = vmatpush.bf16.msra.mxu0 %v380
        %463 = vmatpush.bf16.msra.mxu0 %v374
        %464 = vmatpush.bf16.msra.mxu0 %v368
        %465 = vmatmul.bf16.gmra.mxu0 %v417
        %v466 = vpop.f32.mrf.mxu0
        %v467 = vadd.f32 %v284, %v466
        %v468 = vpop.f32.mrf.mxu0
        %v469 = vadd.f32 %v284, %v468
        %470 = vmatmul.bf16.gmra.mxu0 %v420
        %v471 = vpop.f32.mrf.mxu0
        %v472 = vadd.f32 %v284, %v471
        %v473 = vpop.f32.mrf.mxu0
        %v474 = vadd.f32 %v284, %v473
        %475 = vmatmul.bf16.gmra.mxu0 %v423
        %v476 = vpop.f32.mrf.mxu0
        %v477 = vadd.f32 %v284, %v476
        %v478 = vpop.f32.mrf.mxu0
        %v479 = vadd.f32 %v284, %v478
        %480 = vmatmul.bf16.gmra.mxu0 %v426
        %v481 = vpop.f32.mrf.mxu0
        %v482 = vadd.f32 %v284, %v481
        %v483 = vpop.f32.mrf.mxu0
        %v484 = vadd.f32 %v284, %v483
        %485 = vdwg.mxu0
        %486 = vmatpush.bf16.msra.mxu0 0
        %487 = vmatpush.bf16.msra.mxu0 0
        %488 = vmatpush.bf16.msra.mxu0 0
        %489 = vmatpush.bf16.msra.mxu0 0
        %490 = vmatpush.bf16.msra.mxu0 %v387
        %491 = vmatpush.bf16.msra.mxu0 %v381
        %492 = vmatpush.bf16.msra.mxu0 %v375
        %493 = vmatpush.bf16.msra.mxu0 %v369
        %494 = vmatmul.bf16.gmra.mxu0 %v417
        %v495 = vpop.f32.mrf.mxu0
        %v496 = vadd.f32 %v285, %v495
        %v497 = vpop.f32.mrf.mxu0
        %v498 = vadd.f32 %v285, %v497
        %499 = vmatmul.bf16.gmra.mxu0 %v420
        %v500 = vpop.f32.mrf.mxu0
        %v501 = vadd.f32 %v285, %v500
        %v502 = vpop.f32.mrf.mxu0
        %v503 = vadd.f32 %v285, %v502
        %504 = vmatmul.bf16.gmra.mxu0 %v423
        %v505 = vpop.f32.mrf.mxu0
        %v506 = vadd.f32 %v285, %v505
        %v507 = vpop.f32.mrf.mxu0
        %v508 = vadd.f32 %v285, %v507
        %509 = vmatmul.bf16.gmra.mxu0 %v426
        %v510 = vpop.f32.mrf.mxu0
        %v511 = vadd.f32 %v285, %v510
        %v512 = vpop.f32.mrf.mxu0
        %v513 = vadd.f32 %v285, %v512
        %514 = vdwg.mxu0
        %515 = vmatpush.bf16.msra.mxu0 0
        %516 = vmatpush.bf16.msra.mxu0 0
        %517 = vmatpush.bf16.msra.mxu0 0
        %518 = vmatpush.bf16.msra.mxu0 0
        %519 = vmatpush.bf16.msra.mxu0 %v388
        %520 = vmatpush.bf16.msra.mxu0 %v382
        %521 = vmatpush.bf16.msra.mxu0 %v376
        %522 = vmatpush.bf16.msra.mxu0 %v370
        %523 = vmatmul.bf16.gmra.mxu0 %v417
        %v524 = vpop.f32.mrf.mxu0
        %v525 = vadd.f32 %v286, %v524
        %v526 = vpop.f32.mrf.mxu0
        %v527 = vadd.f32 %v286, %v526
        %528 = vmatmul.bf16.gmra.mxu0 %v420
        %v529 = vpop.f32.mrf.mxu0
        %v530 = vadd.f32 %v286, %v529
        %v531 = vpop.f32.mrf.mxu0
        %v532 = vadd.f32 %v286, %v531
        %533 = vmatmul.bf16.gmra.mxu0 %v423
        %v534 = vpop.f32.mrf.mxu0
        %v535 = vadd.f32 %v286, %v534
        %v536 = vpop.f32.mrf.mxu0
        %v537 = vadd.f32 %v286, %v536
        %538 = vmatmul.bf16.gmra.mxu0 %v426
        %v539 = vpop.f32.mrf.mxu0
        %v540 = vadd.f32 %v286, %v539
        %v541 = vpop.f32.mrf.mxu0
        %v542 = vadd.f32 %v286, %v541
        %543 = vdwg.mxu0
        %544 = vmatpush.bf16.msra.mxu0 0
        %545 = vmatpush.bf16.msra.mxu0 0
        %546 = vmatpush.bf16.msra.mxu0 0
        %547 = vmatpush.bf16.msra.mxu0 0
        %548 = vmatpush.bf16.msra.mxu0 %v389
        %549 = vmatpush.bf16.msra.mxu0 %v383
        %550 = vmatpush.bf16.msra.mxu0 %v377
        %551 = vmatpush.bf16.msra.mxu0 %v371
        %552 = vmatmul.bf16.gmra.mxu0 %v417
        %v553 = vpop.f32.mrf.mxu0
        %v554 = vadd.f32 %v287, %v553
        %v555 = vpop.f32.mrf.mxu0
        %v556 = vadd.f32 %v287, %v555
        %557 = vmatmul.bf16.gmra.mxu0 %v420
        %v558 = vpop.f32.mrf.mxu0
        %v559 = vadd.f32 %v287, %v558
        %v560 = vpop.f32.mrf.mxu0
        %v561 = vadd.f32 %v287, %v560
        %562 = vmatmul.bf16.gmra.mxu0 %v423
        %v563 = vpop.f32.mrf.mxu0
        %v564 = vadd.f32 %v287, %v563
        %v565 = vpop.f32.mrf.mxu0
        %v566 = vadd.f32 %v287, %v565
        %567 = vmatmul.bf16.gmra.mxu0 %v426
        %v568 = vpop.f32.mrf.mxu0
        %v569 = vadd.f32 %v287, %v568
        %v570 = vpop.f32.mrf.mxu0
        %v571 = vadd.f32 %v287, %v570
        %572 = vdwg.mxu0
        %573 = vmatpush.bf16.msra.mxu0 0
        %574 = vmatpush.bf16.msra.mxu0 0
        %575 = vmatpush.bf16.msra.mxu0 0
        %576 = vmatpush.bf16.msra.mxu0 0
        %577 = vmatpush.bf16.msra.mxu0 %v390
        %578 = vmatpush.bf16.msra.mxu0 %v384
        %579 = vmatpush.bf16.msra.mxu0 %v378
        %580 = vmatpush.bf16.msra.mxu0 %v372
        %581 = vmatmul.bf16.gmra.mxu0 %v417
        %v582 = vpop.f32.mrf.mxu0
        %v583 = vadd.f32 %v288, %v582
        %v584 = vpop.f32.mrf.mxu0
        %v585 = vadd.f32 %v288, %v584
        %586 = vmatmul.bf16.gmra.mxu0 %v420
        %v587 = vpop.f32.mrf.mxu0
        %v588 = vadd.f32 %v288, %v587
        %v589 = vpop.f32.mrf.mxu0
        %v590 = vadd.f32 %v288, %v589
        %591 = vmatmul.bf16.gmra.mxu0 %v423
        %v592 = vpop.f32.mrf.mxu0
        %v593 = vadd.f32 %v288, %v592
        %v594 = vpop.f32.mrf.mxu0
        %v595 = vadd.f32 %v288, %v594
        %596 = vmatmul.bf16.gmra.mxu0 %v426
        %v597 = vpop.f32.mrf.mxu0
        %v598 = vadd.f32 %v288, %v597
        %v599 = vpop.f32.mrf.mxu0
        %v600 = vadd.f32 %v288, %v599
        %601 = vdwg.mxu0
        %v602 = vmax.f32 %v438, 0.0
        %v603 = vmax.f32 %v467, 0.0
        %v604 = vmax.f32 %v496, 0.0
        %v605 = vmax.f32 %v525, 0.0
        %v606 = vmax.f32 %v554, 0.0
        %v607 = vmax.f32 %v583, 0.0
        %v608 = vmax.f32 %v440, 0.0
        %v609 = vmax.f32 %v469, 0.0
        %v610 = vmax.f32 %v498, 0.0
        %v611 = vmax.f32 %v527, 0.0
        %v612 = vmax.f32 %v556, 0.0
        %v613 = vmax.f32 %v585, 0.0
        %v614 = vmax.f32 %v443, 0.0
        %v615 = vmax.f32 %v472, 0.0
        %v616 = vmax.f32 %v501, 0.0
        %v617 = vmax.f32 %v530, 0.0
        %v618 = vmax.f32 %v559, 0.0
        %v619 = vmax.f32 %v588, 0.0
        %v620 = vmax.f32 %v445, 0.0
        %v621 = vmax.f32 %v474, 0.0
        %v622 = vmax.f32 %v503, 0.0
        %v623 = vmax.f32 %v532, 0.0
        %v624 = vmax.f32 %v561, 0.0
        %v625 = vmax.f32 %v590, 0.0
        %v626 = vmax.f32 %v448, 0.0
        %v627 = vmax.f32 %v477, 0.0
        %v628 = vmax.f32 %v506, 0.0
        %v629 = vmax.f32 %v535, 0.0
        %v630 = vmax.f32 %v564, 0.0
        %v631 = vmax.f32 %v593, 0.0
        %v632 = vmax.f32 %v450, 0.0
        %v633 = vmax.f32 %v479, 0.0
        %v634 = vmax.f32 %v508, 0.0
        %v635 = vmax.f32 %v537, 0.0
        %v636 = vmax.f32 %v566, 0.0
        %v637 = vmax.f32 %v595, 0.0
        %v638 = vmax.f32 %v453, 0.0
        %v639 = vmax.f32 %v482, 0.0
        %v640 = vmax.f32 %v511, 0.0
        %v641 = vmax.f32 %v540, 0.0
        %v642 = vmax.f32 %v569, 0.0
        %v643 = vmax.f32 %v598, 0.0
        %v644 = vmax.f32 %v455, 0.0
        %v645 = vmax.f32 %v484, 0.0
        %v646 = vmax.f32 %v513, 0.0
        %v647 = vmax.f32 %v542, 0.0
        %v648 = vmax.f32 %v571, 0.0
        %v649 = vmax.f32 %v600, 0.0
        %v650 = vpack.c.bf16 %v603, %v602
        %v651 = vpack.c.bf16 %v605, %v604
        %v652 = vpack.c.bf16 %v607, %v606
        %v653 = vpack.c.bf16 %v609, %v608
        %v654 = vpack.c.bf16 %v611, %v610
        %v655 = vpack.c.bf16 %v613, %v612
        %v656 = vpack.c.bf16 %v615, %v614
        %v657 = vpack.c.bf16 %v617, %v616
        %v658 = vpack.c.bf16 %v619, %v618
        %v659 = vpack.c.bf16 %v621, %v620
        %v660 = vpack.c.bf16 %v623, %v622
        %v661 = vpack.c.bf16 %v625, %v624
        %v662 = vpack.c.bf16 %v627, %v626
        %v663 = vpack.c.bf16 %v629, %v628
        %v664 = vpack.c.bf16 %v631, %v630
        %v665 = vpack.c.bf16 %v633, %v632
        %v666 = vpack.c.bf16 %v635, %v634
        %v667 = vpack.c.bf16 %v637, %v636
        %v668 = vpack.c.bf16 %v639, %v638
        %v669 = vpack.c.bf16 %v641, %v640
        %v670 = vpack.c.bf16 %v643, %v642
        %v671 = vpack.c.bf16 %v645, %v644
        %v672 = vpack.c.bf16 %v647, %v646
        %v673 = vpack.c.bf16 %v649, %v648
        %674 = vst [vmem:[%s222] sm:$0xff] %v650
        %675 = vst [vmem:[%s222 + $0x8] sm:$0xff] %v651
        %676 = vst [vmem:[%s222 + $0x10] sm:$0xff] %v652
        %677 = vst [vmem:[%s222 + $0x18] sm:$0xff] %v653
        %678 = vst [vmem:[%s222 + $0x20] sm:$0xff] %v654
        %679 = vst [vmem:[%s222 + $0x28] sm:$0xff] %v655
        %680 = vst [vmem:[%s222 + $0x30] sm:$0xff] %v656
        %681 = vst [vmem:[%s222 + $0x38] sm:$0xff] %v657
        %682 = vst [vmem:[%s222 + $0x40] sm:$0xff] %v658
        %683 = vst [vmem:[%s222 + $0x48] sm:$0xff] %v659
        %684 = vst [vmem:[%s222 + $0x50] sm:$0xff] %v660
        %685 = vst [vmem:[%s222 + $0x58] sm:$0xff] %v661
        %686 = vst [vmem:[%s222 + $0x60] sm:$0xff] %v662
        %687 = vst [vmem:[%s222 + $0x68] sm:$0xff] %v663
        %688 = vst [vmem:[%s222 + $0x70] sm:$0xff] %v664
        %689 = vst [vmem:[%s222 + $0x78] sm:$0xff] %v665
        %690 = vst [vmem:[%s222 + $0x80] sm:$0xff] %v666
        %691 = vst [vmem:[%s222 + $0x88] sm:$0xff] %v667
        %692 = vst [vmem:[%s222 + $0x90] sm:$0xff] %v668
        %693 = vst [vmem:[%s222 + $0x98] sm:$0xff] %v669
        %694 = vst [vmem:[%s222 + $0xa0] sm:$0xff] %v670
        %695 = vst [vmem:[%s222 + $0xa8] sm:$0xff] %v671
        %696 = vst [vmem:[%s222 + $0xb0] sm:$0xff] %v672
        %697 = vst [vmem:[%s222 + $0xb8] sm:$0xff] %v673
        %s698 = smul.u32 %s23, 64
        %v699 = vlaneseq
        %v700 = vshrl.u32 %v699, 7
        %v701 = vadd.s32 %v700, 8
        %v702 = vadd.s32 %v700, 16
        %v703 = vadd.s32 %v700, 24
        %v704 = vadd.s32 %v700, 32
        %v705 = vadd.s32 %v700, 40
        %v706 = vadd.s32 %v700, 48
        %v707 = vadd.s32 %v700, 56
        %v708 = vstv %s698
        %v709 = vadd.s32 %v708, %v700
        %v710 = vadd.s32 %v708, %v701
        %v711 = vadd.s32 %v708, %v702
        %v712 = vadd.s32 %v708, %v703
        %v713 = vadd.s32 %v708, %v704
        %v714 = vadd.s32 %v708, %v705
        %v715 = vadd.s32 %v708, %v706
        %v716 = vadd.s32 %v708, %v707
        %vm717 = vcmp.lt.s32.totalorder %v709, 200
        %vm718 = vcmp.lt.s32.totalorder %v710, 200
        %vm719 = vcmp.lt.s32.totalorder %v711, 200
        %vm720 = vcmp.lt.s32.totalorder %v712, 200
        %vm721 = vcmp.lt.s32.totalorder %v713, 200
        %vm722 = vcmp.lt.s32.totalorder %v714, 200
        %vm723 = vcmp.lt.s32.totalorder %v715, 200
        %vm724 = vcmp.lt.s32.totalorder %v716, 200
        %v725 = vsel %vm717, 1, 0
        %v726 = vsel %vm718, 1, 0
        %v727 = vsel %vm719, 1, 0
        %v728 = vsel %vm720, 1, 0
        %v729 = vsel %vm721, 1, 0
        %v730 = vsel %vm722, 1, 0
        %v731 = vsel %vm723, 1, 0
        %v732 = vsel %vm724, 1, 0
        %vm733 = vcmp.eq.s32.totalorder %v725, 1
        %vm734 = vcmp.eq.s32.totalorder %v726, 1
        %vm735 = vcmp.eq.s32.totalorder %v727, 1
        %vm736 = vcmp.eq.s32.totalorder %v728, 1
        %vm737 = vcmp.eq.s32.totalorder %v729, 1
        %vm738 = vcmp.eq.s32.totalorder %v730, 1
        %vm739 = vcmp.eq.s32.totalorder %v731, 1
        %vm740 = vcmp.eq.s32.totalorder %v732, 1
        %v741 = vsel %vm733, %v602, 0.0
        %v742 = vsel %vm733, %v603, 0.0
        %v743 = vsel %vm733, %v604, 0.0
        %v744 = vsel %vm733, %v605, 0.0
        %v745 = vsel %vm733, %v606, 0.0
        %v746 = vsel %vm733, %v607, 0.0
        %v747 = vsel %vm734, %v608, 0.0
        %v748 = vsel %vm734, %v609, 0.0
        %v749 = vsel %vm734, %v610, 0.0
        %v750 = vsel %vm734, %v611, 0.0
        %v751 = vsel %vm734, %v612, 0.0
        %v752 = vsel %vm734, %v613, 0.0
        %v753 = vsel %vm735, %v614, 0.0
        %v754 = vsel %vm735, %v615, 0.0
        %v755 = vsel %vm735, %v616, 0.0
        %v756 = vsel %vm735, %v617, 0.0
        %v757 = vsel %vm735, %v618, 0.0
        %v758 = vsel %vm735, %v619, 0.0
        %v759 = vsel %vm736, %v620, 0.0
        %v760 = vsel %vm736, %v621, 0.0
        %v761 = vsel %vm736, %v622, 0.0
        %v762 = vsel %vm736, %v623, 0.0
        %v763 = vsel %vm736, %v624, 0.0
        %v764 = vsel %vm736, %v625, 0.0
        %v765 = vsel %vm737, %v626, 0.0
        %v766 = vsel %vm737, %v627, 0.0
        %v767 = vsel %vm737, %v628, 0.0
        %v768 = vsel %vm737, %v629, 0.0
        %v769 = vsel %vm737, %v630, 0.0
        %v770 = vsel %vm737, %v631, 0.0
        %v771 = vsel %vm738, %v632, 0.0
        %v772 = vsel %vm738, %v633, 0.0
        %v773 = vsel %vm738, %v634, 0.0
        %v774 = vsel %vm738, %v635, 0.0
        %v775 = vsel %vm738, %v636, 0.0
        %v776 = vsel %vm738, %v637, 0.0
        %v777 = vsel %vm739, %v638, 0.0
        %v778 = vsel %vm739, %v639, 0.0
        %v779 = vsel %vm739, %v640, 0.0
        %v780 = vsel %vm739, %v641, 0.0
        %v781 = vsel %vm739, %v642, 0.0
        %v782 = vsel %vm739, %v643, 0.0
        %v783 = vsel %vm740, %v644, 0.0
        %v784 = vsel %vm740, %v645, 0.0
        %v785 = vsel %vm740, %v646, 0.0
        %v786 = vsel %vm740, %v647, 0.0
        %v787 = vsel %vm740, %v648, 0.0
        %v788 = vsel %vm740, %v649, 0.0
        %v789 = vadd.f32 %v741, %v747
        %v790 = vadd.f32 %v789, %v753
        %v791 = vadd.f32 %v790, %v759
        %v792 = vadd.f32 %v791, %v765
        %v793 = vadd.f32 %v792, %v771
        %v794 = vadd.f32 %v793, %v777
        %v795 = vadd.f32 %v794, %v783
        %v796 = vrot.slane %v795, 4
        %v797 = vadd.f32 %v795, %v796
        %v798 = vrot.slane %v797, 2
        %v799 = vadd.f32 %v797, %v798
        %v800 = vrot.slane %v799, 1
        %v801 = vadd.f32 %v799, %v800
        %v802 = vadd.f32 %v742, %v748
        %v803 = vadd.f32 %v802, %v754
        %v804 = vadd.f32 %v803, %v760
        %v805 = vadd.f32 %v804, %v766
        %v806 = vadd.f32 %v805, %v772
        %v807 = vadd.f32 %v806, %v778
        %v808 = vadd.f32 %v807, %v784
        %v809 = vrot.slane %v808, 4
        %v810 = vadd.f32 %v808, %v809
        %v811 = vrot.slane %v810, 2
        %v812 = vadd.f32 %v810, %v811
        %v813 = vrot.slane %v812, 1
        %v814 = vadd.f32 %v812, %v813
        %v815 = vadd.f32 %v743, %v749
        %v816 = vadd.f32 %v815, %v755
        %v817 = vadd.f32 %v816, %v761
        %v818 = vadd.f32 %v817, %v767
        %v819 = vadd.f32 %v818, %v773
        %v820 = vadd.f32 %v819, %v779
        %v821 = vadd.f32 %v820, %v785
        %v822 = vrot.slane %v821, 4
        %v823 = vadd.f32 %v821, %v822
        %v824 = vrot.slane %v823, 2
        %v825 = vadd.f32 %v823, %v824
        %v826 = vrot.slane %v825, 1
        %v827 = vadd.f32 %v825, %v826
        %v828 = vadd.f32 %v744, %v750
        %v829 = vadd.f32 %v828, %v756
        %v830 = vadd.f32 %v829, %v762
        %v831 = vadd.f32 %v830, %v768
        %v832 = vadd.f32 %v831, %v774
        %v833 = vadd.f32 %v832, %v780
        %v834 = vadd.f32 %v833, %v786
        %v835 = vrot.slane %v834, 4
        %v836 = vadd.f32 %v834, %v835
        %v837 = vrot.slane %v836, 2
        %v838 = vadd.f32 %v836, %v837
        %v839 = vrot.slane %v838, 1
        %v840 = vadd.f32 %v838, %v839
        %v841 = vadd.f32 %v745, %v751
        %v842 = vadd.f32 %v841, %v757
        %v843 = vadd.f32 %v842, %v763
        %v844 = vadd.f32 %v843, %v769
        %v845 = vadd.f32 %v844, %v775
        %v846 = vadd.f32 %v845, %v781
        %v847 = vadd.f32 %v846, %v787
        %v848 = vrot.slane %v847, 4
        %v849 = vadd.f32 %v847, %v848
        %v850 = vrot.slane %v849, 2
        %v851 = vadd.f32 %v849, %v850
        %v852 = vrot.slane %v851, 1
        %v853 = vadd.f32 %v851, %v852
        %v854 = vadd.f32 %v746, %v752
        %v855 = vadd.f32 %v854, %v758
        %v856 = vadd.f32 %v855, %v764
        %v857 = vadd.f32 %v856, %v770
        %v858 = vadd.f32 %v857, %v776
        %v859 = vadd.f32 %v858, %v782
        %v860 = vadd.f32 %v859, %v788
        %v861 = vrot.slane %v860, 4
        %v862 = vadd.f32 %v860, %v861
        %v863 = vrot.slane %v862, 2
        %v864 = vadd.f32 %v862, %v863
        %v865 = vrot.slane %v864, 1
        %v866 = vadd.f32 %v864, %v865
        %v873 = vrot.slane %v814, 7
        %v874 = vrot.slane %v827, 6
        %v875 = vrot.slane %v840, 5
        %v876 = vrot.slane %v853, 4
        %v877 = vrot.slane %v866, 3
        %vm878 = vcmask 1040384
        %v879 = vsel %vm878, %v801, %v873
        %vm880 = vcmask 1041408
        %v881 = vsel %vm880, %v879, %v874
        %vm882 = vcmask 1043459
        %v883 = vsel %vm882, %v875, %v876
        %vm884 = vcmask 1044483
        %v885 = vsel %vm884, %v883, %v877
        %vm886 = vcmask 1042432
        %v887 = vsel %vm886, %v881, %v885
        %v889 = vlaneseq
        %vm890 = vcmp.ge.s32.totalorder %v889, 0
        %vm891 = vcmp.lt.s32.totalorder %v889, 768
        %vm892 = vmand %vm890, %vm891
        %893 = vst.msk [vmem:[%s229] sm:$0x3f] %vm892, %v887
        %v894 = vmul.f32 %v741, %v741
        %v895 = vmul.f32 %v742, %v742
        %v896 = vmul.f32 %v743, %v743
        %v897 = vmul.f32 %v744, %v744
        %v898 = vmul.f32 %v745, %v745
        %v899 = vmul.f32 %v746, %v746
        %v900 = vmul.f32 %v747, %v747
        %v901 = vmul.f32 %v748, %v748
        %v902 = vmul.f32 %v749, %v749
        %v903 = vmul.f32 %v750, %v750
        %v904 = vmul.f32 %v751, %v751
        %v905 = vmul.f32 %v752, %v752
        %v906 = vmul.f32 %v753, %v753
        %v907 = vmul.f32 %v754, %v754
        %v908 = vmul.f32 %v755, %v755
        %v909 = vmul.f32 %v756, %v756
        %v910 = vmul.f32 %v757, %v757
        %v911 = vmul.f32 %v758, %v758
        %v912 = vmul.f32 %v759, %v759
        %v913 = vmul.f32 %v760, %v760
        %v914 = vmul.f32 %v761, %v761
        %v915 = vmul.f32 %v762, %v762
        %v916 = vmul.f32 %v763, %v763
        %v917 = vmul.f32 %v764, %v764
        %v918 = vmul.f32 %v765, %v765
        %v919 = vmul.f32 %v766, %v766
        %v920 = vmul.f32 %v767, %v767
        %v921 = vmul.f32 %v768, %v768
        %v922 = vmul.f32 %v769, %v769
        %v923 = vmul.f32 %v770, %v770
        %v924 = vmul.f32 %v771, %v771
        %v925 = vmul.f32 %v772, %v772
        %v926 = vmul.f32 %v773, %v773
        %v927 = vmul.f32 %v774, %v774
        %v928 = vmul.f32 %v775, %v775
        %v929 = vmul.f32 %v776, %v776
        %v930 = vmul.f32 %v777, %v777
        %v931 = vmul.f32 %v778, %v778
        %v932 = vmul.f32 %v779, %v779
        %v933 = vmul.f32 %v780, %v780
        %v934 = vmul.f32 %v781, %v781
        %v935 = vmul.f32 %v782, %v782
        %v936 = vmul.f32 %v783, %v783
        %v937 = vmul.f32 %v784, %v784
        %v938 = vmul.f32 %v785, %v785
        %v939 = vmul.f32 %v786, %v786
        %v940 = vmul.f32 %v787, %v787
        %v941 = vmul.f32 %v788, %v788
        %v942 = vadd.f32 %v894, %v900
        %v943 = vadd.f32 %v942, %v906
        %v944 = vadd.f32 %v943, %v912
        %v945 = vadd.f32 %v944, %v918
        %v946 = vadd.f32 %v945, %v924
        %v947 = vadd.f32 %v946, %v930
        %v948 = vadd.f32 %v947, %v936
        %v949 = vrot.slane %v948, 4
        %v950 = vadd.f32 %v948, %v949
        %v951 = vrot.slane %v950, 2
        %v952 = vadd.f32 %v950, %v951
        %v953 = vrot.slane %v952, 1
        %v954 = vadd.f32 %v952, %v953
        %v955 = vadd.f32 %v895, %v901
        %v956 = vadd.f32 %v955, %v907
        %v957 = vadd.f32 %v956, %v913
        %v958 = vadd.f32 %v957, %v919
        %v959 = vadd.f32 %v958, %v925
        %v960 = vadd.f32 %v959, %v931
        %v961 = vadd.f32 %v960, %v937
        %v962 = vrot.slane %v961, 4
        %v963 = vadd.f32 %v961, %v962
        %v964 = vrot.slane %v963, 2
        %v965 = vadd.f32 %v963, %v964
        %v966 = vrot.slane %v965, 1
        %v967 = vadd.f32 %v965, %v966
        %v968 = vadd.f32 %v896, %v902
        %v969 = vadd.f32 %v968, %v908
        %v970 = vadd.f32 %v969, %v914
        %v971 = vadd.f32 %v970, %v920
        %v972 = vadd.f32 %v971, %v926
        %v973 = vadd.f32 %v972, %v932
        %v974 = vadd.f32 %v973, %v938
        %v975 = vrot.slane %v974, 4
        %v976 = vadd.f32 %v974, %v975
        %v977 = vrot.slane %v976, 2
        %v978 = vadd.f32 %v976, %v977
        %v979 = vrot.slane %v978, 1
        %v980 = vadd.f32 %v978, %v979
        %v981 = vadd.f32 %v897, %v903
        %v982 = vadd.f32 %v981, %v909
        %v983 = vadd.f32 %v982, %v915
        %v984 = vadd.f32 %v983, %v921
        %v985 = vadd.f32 %v984, %v927
        %v986 = vadd.f32 %v985, %v933
        %v987 = vadd.f32 %v986, %v939
        %v988 = vrot.slane %v987, 4
        %v989 = vadd.f32 %v987, %v988
        %v990 = vrot.slane %v989, 2
        %v991 = vadd.f32 %v989, %v990
        %v992 = vrot.slane %v991, 1
        %v993 = vadd.f32 %v991, %v992
        %v994 = vadd.f32 %v898, %v904
        %v995 = vadd.f32 %v994, %v910
        %v996 = vadd.f32 %v995, %v916
        %v997 = vadd.f32 %v996, %v922
        %v998 = vadd.f32 %v997, %v928
        %v999 = vadd.f32 %v998, %v934
        %v1000 = vadd.f32 %v999, %v940
        %v1001 = vrot.slane %v1000, 4
        %v1002 = vadd.f32 %v1000, %v1001
        %v1003 = vrot.slane %v1002, 2
        %v1004 = vadd.f32 %v1002, %v1003
        %v1005 = vrot.slane %v1004, 1
        %v1006 = vadd.f32 %v1004, %v1005
        %v1007 = vadd.f32 %v899, %v905
        %v1008 = vadd.f32 %v1007, %v911
        %v1009 = vadd.f32 %v1008, %v917
        %v1010 = vadd.f32 %v1009, %v923
        %v1011 = vadd.f32 %v1010, %v929
        %v1012 = vadd.f32 %v1011, %v935
        %v1013 = vadd.f32 %v1012, %v941
        %v1014 = vrot.slane %v1013, 4
        %v1015 = vadd.f32 %v1013, %v1014
        %v1016 = vrot.slane %v1015, 2
        %v1017 = vadd.f32 %v1015, %v1016
        %v1018 = vrot.slane %v1017, 1
        %v1019 = vadd.f32 %v1017, %v1018
        %v1026 = vrot.slane %v967, 7
        %v1027 = vrot.slane %v980, 6
        %v1028 = vrot.slane %v993, 5
        %v1029 = vrot.slane %v1006, 4
        %v1030 = vrot.slane %v1019, 3
        %v1031 = vsel %vm878, %v954, %v1026
        %v1032 = vsel %vm880, %v1031, %v1027
        %v1033 = vsel %vm882, %v1028, %v1029
        %v1034 = vsel %vm884, %v1033, %v1030
        %v1035 = vsel %vm886, %v1032, %v1034
        %1037 = vst.msk [vmem:[%s236] sm:$0x3f] %vm892, %v1035
        %s1038 = sand.u32 %s99, 1
        %s1039 = scalar_lea.sflag [#allocation3], %s1038
        %s1040 = sand.u32 %s99, 1
        %s1041 = smul.addr %s1040, 192
        %s1042 = scalar_lea.vmem [#allocation2], %s1041
        %s1043 = sand.u32 %s23, 1
        %s1044 = scalar_lea.sflag [#allocation5], %s1043
        %s1045 = sand.u32 %s125, 1
        %s1046 = smul.addr %s1045, 6
        %s1047 = scalar_lea.vmem [#allocation4], %s1046
        %s1048 = sand.u32 %s23, 1
        %s1049 = scalar_lea.sflag [#allocation5], %s1048
        %s1050 = sand.u32 %s151, 1
        %s1051 = smul.addr %s1050, 6
        %s1052 = scalar_lea.vmem [#allocation6], %s1051
        // Predicated region
        $region33: #{tpu_custom_call.1} parent=31 // pred_check
          %p1053 = pneg %p109
        $region34: #{tpu_custom_call.1} parent=31 // pred_check_branch
          %1055 = sbr.rel (%p1053) target = $region36
        $region35: #{tpu_custom_call.1} parent=31 // pred_region
          %s1056 = smul.u32 8, %s23
          %1058 = vsyncadd %s1039, 0
          %s1059 = smul.addr %s1056, 6
          %s1060 = smul.addr %s1059, 4
          %s1061 = scalar_lea.hbm %s3, %s1060
          %s1062 = sshll.u32 %s1042, 4
          %s1063 = int_to_ptr.vmem [resolvable:$true] %s1062
          %s1064 = sshll.u32 %s1061, 4
          %s1065 = int_to_ptr.hbm [resolvable:$true] %s1064
          %1070 = dma.vmem_to_hbm [thread:$0]  %s1063, 3072, %s1065, %s1039, 384, 384, 24
        $region36: #{tpu_custom_call.1} parent=31 // pred_fallthru
          _
        // Predicated region
        $region37: #{tpu_custom_call.1} parent=31 // pred_check
          %p1071 = pneg %p135
        $region38: #{tpu_custom_call.1} parent=31 // pred_check_branch
          %1073 = sbr.rel (%p1071) target = $region40
        $region39: #{tpu_custom_call.1} parent=31 // pred_region
          %1075 = vsyncadd %s1044, 0
          %s1076 = smul.addr %s23, 6
          %s1077 = scalar_lea.hbm %s4, %s1076
          %s1079 = sshll.u32 %s1047, 4
          %s1080 = int_to_ptr.vmem [resolvable:$true] %s1079
          %s1081 = sshll.u32 %s1077, 4
          %s1082 = int_to_ptr.hbm [resolvable:$true] %s1081
          %1084 = dma.vmem_to_hbm [thread:$0]  %s1080, 96, %s1082, %s1044
        $region40: #{tpu_custom_call.1} parent=31 // pred_fallthru
          _
        // Predicated region
        $region41: #{tpu_custom_call.1} parent=31 // pred_check
          %p1085 = pneg %p161
        $region42: #{tpu_custom_call.1} parent=31 // pred_check_branch
          %1087 = sbr.rel (%p1085) target = $region44
        $region43: #{tpu_custom_call.1} parent=31 // pred_region
          %1089 = vsyncadd %s1049, 0
          %s1090 = smul.addr %s23, 6
          %s1091 = scalar_lea.hbm %s5, %s1090
          %s1093 = sshll.u32 %s1052, 4
          %s1094 = int_to_ptr.vmem [resolvable:$true] %s1093
          %s1095 = sshll.u32 %s1091, 4
          %s1096 = int_to_ptr.hbm [resolvable:$true] %s1095
          %1098 = dma.vmem_to_hbm [thread:$0]  %s1094, 96, %s1096, %s1049
        $region44: #{tpu_custom_call.1} parent=31 // pred_fallthru
          _
      $region32: #{tpu_custom_call.1} parent=5 // pred_fallthru
        _
      %p1099 = scmp.le.s32.totalorder 2, %s18
      // Predicated region
      $region45: #{tpu_custom_call.1} parent=5 // pred_check
        %p1100 = pneg %p1099
      $region46: #{tpu_custom_call.1} parent=5 // pred_check_branch
        %1102 = sbr.rel (%p1100) target = $region48
      $region47: #{tpu_custom_call.1} parent=5 // pred_region
        %s1103 = ssub.s32 %s18, 2
        // Predicated region
        $region49: #{tpu_custom_call.1} parent=47 // pred_check
          %p1104 = pneg %p115
        $region50: #{tpu_custom_call.1} parent=47 // pred_check_branch
          %1106 = sbr.rel (%p1104) target = $region52
        $region51: #{tpu_custom_call.1} parent=47 // pred_region
          %s1107 = sand.u32 %s100, 1
          %s1108 = scalar_lea.sflag [#allocation3], %s1107
          %s1109 = sand.u32 %s100, 1
          %s1110 = smul.addr %s1109, 192
          %s1111 = scalar_lea.vmem [#allocation2], %s1110
          %1113 = dma.done %s1108, 3072
        $region52: #{tpu_custom_call.1} parent=47 // pred_fallthru
          _
        // Predicated region
        $region53: #{tpu_custom_call.1} parent=47 // pred_check
          %p1114 = pneg %p141
        $region54: #{tpu_custom_call.1} parent=47 // pred_check_branch
          %1116 = sbr.rel (%p1114) target = $region56
        $region55: #{tpu_custom_call.1} parent=47 // pred_region
          %s1117 = sand.u32 %s24, 1
          %s1118 = scalar_lea.sflag [#allocation5], %s1117
          %s1119 = sand.u32 %s126, 1
          %s1120 = smul.addr %s1119, 6
          %s1121 = scalar_lea.vmem [#allocation4], %s1120
          %1123 = dma.done %s1118, 96
        $region56: #{tpu_custom_call.1} parent=47 // pred_fallthru
          _
        // Predicated region
        $region57: #{tpu_custom_call.1} parent=47 // pred_check
          %p1124 = pneg %p167
        $region58: #{tpu_custom_call.1} parent=47 // pred_check_branch
          %1126 = sbr.rel (%p1124) target = $region60
        $region59: #{tpu_custom_call.1} parent=47 // pred_region
          %s1127 = sand.u32 %s24, 1
          %s1128 = scalar_lea.sflag [#allocation5], %s1127
          %s1129 = sand.u32 %s152, 1
          %s1130 = smul.addr %s1129, 6
          %s1131 = scalar_lea.vmem [#allocation6], %s1130
          %1133 = dma.done %s1128, 96
        $region60: #{tpu_custom_call.1} parent=47 // pred_fallthru
          _
      $region48: #{tpu_custom_call.1} parent=5 // pred_fallthru
        _
    $region6: #{tpu_custom_call.1} parent=1 // loop_footer
      %s22 = sadd.s32 1, %s18
    $region7: #{tpu_custom_call.1} parent=1 // loop_footer_branch
      %17 = sbr.rel target = $region3
    $region8: #{tpu_custom_call.1} parent=1 // loop_exit
      _
    %1134 = vsyncpa [#allocation3], 1
    %s1135 = scalar_lea.sflag [#allocation3], 1
    %1136 = vsyncpa %s1135, 1
    %1137 = vsyncpa [#allocation5], 1
    %s1138 = scalar_lea.sflag [#allocation5], 1
    %1139 = vsyncpa %s1138, 1

</llo_original>
